<compile_context>
chip_gen: v7x
topology: tpu7x:2x2x1
jax: 0.10.0
libtpu: 0.0.40
codegen_flags: <defaults>
</compile_context>

<pallas_src>
import functools

import jax
import jax.numpy as jnp
from jax.experimental import pallas as pl
from jax.experimental.pallas import tpu as pltpu


def _round_up(x, m):
    return ((x + m - 1) // m) * m


def _vmem_capacity_bytes():
    try:
        return int(pltpu.get_tpu_info().vmem_capacity_bytes)
    except Exception:
        return 64 * 1024 * 1024  # conservative default (v7x per-TC VMEM)


def _estimate_vmem_bytes(tile_b, n_spk, hidden, half, itemsize):
    # single-buffered weights (+ f32 biases / w3 row / b3)
    weight = (2 * hidden * hidden + hidden * half) * itemsize \
        + (hidden + 2 * half + 1) * 4
    # double-buffered inputs / output tiles
    io = 2 * ((n_spk * tile_b * hidden + tile_b * hidden) * itemsize
              + n_spk * tile_b * 4)
    # in-kernel activations
    act = (tile_b * hidden * 4                     # resp_proj (f32)
           + n_spk * tile_b * hidden * 4           # spk matmul / h1 (f32)
           + n_spk * tile_b * hidden * itemsize    # h1 cast for fc2
           + n_spk * tile_b * half * 4             # h2 (f32)
           + n_spk * tile_b * 4)                   # score (f32)
    return weight + io + act


def _pick_tile_b(batch, n_spk, hidden, half, itemsize, vmem_cap):
    if batch <= 128:
        return _round_up(batch, 8)
    if batch <= 256:
        # two grid tiles so both v7x TensorCores get work; harmless on v5e/v6e.
        return 128
    budget = int(0.6 * vmem_cap)  # headroom for compiler scratch / pipelining
    if _estimate_vmem_bytes(256, n_spk, hidden, half, itemsize) <= budget:
        return 256
    return 128


def _spk_similarity_kernel(spk_ref, resp_ref,
                           w1s_ref, w1r_ref, b1_ref,
                           w2_ref, b2_ref,
                           w3_ref, b3_ref,
                           score_ref):
    # spk_ref   : (n_spk, TILE_B, hidden)  contiguous per-speaker batch rows
    # resp_ref  : (TILE_B, hidden)         true-response rows for this tile
    # score_ref : (n_spk, TILE_B)          lane-dense output block
    n_spk, tile_b, hidden = spk_ref.shape
    half = w2_ref.shape[1]

    # Response projection: speaker-independent, computed ONCE per batch tile.
    resp_proj = (jnp.dot(resp_ref[...], w1r_ref[...],
                         preferred_element_type=jnp.float32)
                 + b1_ref[...])                                    # (TB, H) f32

    # Fold the speaker axis into the matmul M dimension (free reshape:
    # tile_b % 8 == 0, hidden is the full lane extent).
    spk2d = spk_ref[...].reshape(n_spk * tile_b, hidden)
    spk_mm = jnp.dot(spk2d, w1s_ref[...],
                     preferred_element_type=jnp.float32)           # (S*TB, H) f32

    # fc1 + tanh: response half broadcast across speakers (no concat copies).
    h1 = jnp.tanh(spk_mm.reshape(n_spk, tile_b, hidden)
                  + resp_proj[None, :, :])                         # (S, TB, H) f32

    # fc2 + tanh: one full-occupancy MXU matmul covering all speakers.
    h1c = h1.reshape(n_spk * tile_b, hidden).astype(w2_ref.dtype)
    h2 = jnp.tanh(jnp.dot(h1c, w2_ref[...],
                          preferred_element_type=jnp.float32)
                  + b2_ref[...])                                   # (S*TB, H/2) f32

    # fc3: N=1 matmul would waste an MXU pass and force 1-lane stores; instead
    # a single VPU multiply + lane reduce + one lane-dense full-block store.
    w3_row = w3_ref[...]                                           # (1, H/2) f32
    score = jnp.sum(h2.reshape(n_spk, tile_b, half) * w3_row[None, :, :],
                    axis=-1)                                       # (S, TB) f32
    score_ref[...] = score + b3_ref[0]                             # b3 from SMEM


def spk_similarity(spk_emb, resp_true, params, *, compute_dtype=jnp.bfloat16):
    """spk_emb: (batch, n_spk, hidden); resp_true: (batch, hidden).

    Returns score of shape (n_spk, batch), matching the PyTorch module.
    Matmuls run in `compute_dtype` (default bfloat16, MXU-native) with f32
    accumulation; biases and tanh stay f32.  Pass compute_dtype=jnp.float32
    to match the f32 reference numerics tightly.
    """
    w1s, w1r, b1, w2, b2, w3, b3 = params
    batch, n_spk, hidden = spk_emb.shape
    half = w2.shape[1]
    itemsize = jnp.dtype(compute_dtype).itemsize
    vmem_cap = _vmem_capacity_bytes()

    # ---- batch tiling ---------------------------------------------------
    tile_b = _pick_tile_b(batch, n_spk, hidden, half, itemsize, vmem_cap)
    padded_b = _round_up(batch, tile_b)

    # One cheap XLA HBM transpose so the kernel's block is contiguous along
    # (speaker, batch-tile) and the in-kernel reshapes are free views.
    spk_t = jnp.transpose(spk_emb, (1, 0, 2)).astype(compute_dtype)
    resp_p = resp_true.astype(compute_dtype)
    if padded_b != batch:
        pad = padded_b - batch
        spk_t = jnp.pad(spk_t, ((0, 0), (0, pad), (0, 0)))
        resp_p = jnp.pad(resp_p, ((0, pad), (0, 0)))
    n_tiles = padded_b // tile_b

    # ---- dtype handling -------------------------------------------------
    w1s_c = w1s.astype(compute_dtype)
    w1r_c = w1r.astype(compute_dtype)
    w2_c = w2.astype(compute_dtype)
    b1_f = b1.astype(jnp.float32).reshape(1, hidden)
    b2_f = b2.astype(jnp.float32).reshape(1, half)
    w3_row = w3.astype(jnp.float32).reshape(1, half)   # fc3 weight as a row
    b3_s = b3.astype(jnp.float32).reshape(1,)          # scalar -> SMEM

    # ---- VMEM budget / compiler params -----------------------------------
    est = _estimate_vmem_bytes(tile_b, n_spk, hidden, half, itemsize)
    compiler_kwargs = {"dimension_semantics": ("parallel",)}
    if est > 16 * 1024 * 1024:
        # chip-aware cap (v7x has only 64 MiB physical VMEM per TensorCore)
        compiler_kwargs["vmem_limit_bytes"] = int(
            min(2 * est, int(0.75 * vmem_cap)))

    cost = pl.CostEstimate(
        flops=int(2 * n_spk * padded_b * hidden * (hidden + half)
                  + 2 * padded_b * hidden * hidden
                  + 2 * n_spk * padded_b * half),
        transcendentals=int(n_spk * padded_b * (hidden + half)),
        bytes_accessed=int(
            (spk_t.size + resp_p.size
             + w1s_c.size + w1r_c.size + w2_c.size) * itemsize
            + (b1_f.size + b2_f.size + w3_row.size + 1) * 4
            + n_spk * padded_b * 4),
    )

    def _weight_spec(shape, single_buffer):
        idx = lambda i, _nd=len(shape): (0,) * _nd
        if single_buffer:
            try:
                # loop-invariant: single-buffer to halve weight VMEM residency
                return pl.BlockSpec(shape, idx, pipeline_mode=pl.Buffered(1))
            except TypeError:  # toolchain without pipeline_mode kwarg
                pass
        return pl.BlockSpec(shape, idx)

    def _run(single_buffer_weights):
        ws = functools.partial(_weight_spec,
                               single_buffer=single_buffer_weights)
        return pl.pallas_call(
            _spk_similarity_kernel,
            out_shape=jax.ShapeDtypeStruct((n_spk, padded_b), jnp.float32),
            grid=(n_tiles,),
            in_specs=[
                pl.BlockSpec((n_spk, tile_b, hidden), lambda i: (0, i, 0)),
                pl.BlockSpec((tile_b, hidden), lambda i: (i, 0)),
                ws((hidden, hidden)),   # w1s (speaker half of fc1.weight.T)
                ws((hidden, hidden)),   # w1r (response half of fc1.weight.T)
                ws((1, hidden)),        # b1
                ws((hidden, half)),     # w2
                ws((1, half)),          # b2
                ws((1, half)),          # w3 as row vector
                pl.BlockSpec(memory_space=pltpu.MemorySpace.SMEM),  # b3 scalar
            ],
            out_specs=pl.BlockSpec((n_spk, tile_b), lambda i: (0, i)),
            compiler_params=pltpu.CompilerParams(**compiler_kwargs),
            cost_estimate=cost,
        )(spk_t, resp_p, w1s_c, w1r_c, b1_f, w2_c, b2_f, w3_row, b3_s)

    try:
        score = _run(True)
    except Exception:
        # Fallback if Buffered(1) weight specs are rejected by this toolchain;
        # kernel semantics are identical, only weight buffering differs.
        score = _run(False)

    return score[:, :batch]   # (n_spk, batch), drop batch padding


def init_params(key, hidden):
    """Deterministic init matching nn.Linear's default U(-1/sqrt(fan_in), ...)."""
    half = hidden // 2
    keys = jax.random.split(key, 6)

    def lin(kw, kb, fan_in, fan_out):
        bound = 1.0 / float(fan_in) ** 0.5
        w = jax.random.uniform(kw, (fan_in, fan_out), jnp.float32, -bound, bound)
        b = jax.random.uniform(kb, (1, fan_out), jnp.float32, -bound, bound)
        return w, b

    w1, b1 = lin(keys[0], keys[1], 2 * hidden, hidden)   # fc1: 2H -> H
    w2, b2 = lin(keys[2], keys[3], hidden, half)         # fc2: H  -> H/2
    w3, b3 = lin(keys[4], keys[5], half, 1)              # fc3: H/2 -> 1
    w1s, w1r = w1[:hidden], w1[hidden:]                  # split fc1 weight
    return (w1s, w1r, b1, w2, b2, w3, b3)


def spk_similarity_ref(spk_emb, resp_true, params):
    """Pure-JAX reference mirroring the PyTorch forward (per-speaker loop)."""
    w1s, w1r, b1, w2, b2, w3, b3 = params
    spk_t = jnp.transpose(spk_emb, (1, 0, 2))   # (n_spk, batch, hidden)

    def per_spk(spk):
        h1 = jnp.tanh(spk @ w1s + resp_true @ w1r + b1)
        h2 = jnp.tanh(h1 @ w2 + b2)
        return (h2 @ w3 + b3)[:, 0]              # squeeze -> (batch,)

    return jax.vmap(per_spk)(spk_t)              # (n_spk, batch)


if __name__ == "__main__":
    batch, n_spk, hidden = 4, 3, 32

    key = jax.random.PRNGKey(0)
    k_spk, k_resp, k_params = jax.random.split(key, 3)

    spk_emb = jax.random.normal(k_spk, (batch, n_spk, hidden), jnp.float32)
    resp_true = jax.random.normal(k_resp, (batch, hidden), jnp.float32)
    params = init_params(k_params, hidden)

    ref = spk_similarity_ref(spk_emb, resp_true, params)

    # f32 path: validates kernel math tightly against the reference.
    score_f32 = jax.block_until_ready(
        spk_similarity(spk_emb, resp_true, params, compute_dtype=jnp.float32))
    assert score_f32.shape == (n_spk, batch), score_f32.shape
    assert jnp.allclose(score_f32, ref, atol=1e-3, rtol=1e-3), (score_f32, ref)

    # Default (bf16-matmul) production path: looser tolerance vs f32 reference.
    score_bf16 = jax.block_until_ready(
        spk_similarity(spk_emb, resp_true, params))
    assert score_bf16.shape == (n_spk, batch), score_bf16.shape
    assert jnp.allclose(score_bf16, ref, atol=5e-2, rtol=5e-2), (score_bf16, ref)

    print("KERNEL_OK")
</pallas_src>

<mosaic_0001>
module attributes {stable_mosaic.version = 11 : i64} {
  func.func @_spk_similarity_kernel(%arg0: i32, %arg1: memref<3x8x32xf32, #tpu.memory_space<vmem>>, %arg2: memref<8x32xf32, #tpu.memory_space<vmem>>, %arg3: memref<32x32xf32, #tpu.memory_space<vmem>>, %arg4: memref<32x32xf32, #tpu.memory_space<vmem>>, %arg5: memref<1x32xf32, #tpu.memory_space<vmem>>, %arg6: memref<32x16xf32, #tpu.memory_space<vmem>>, %arg7: memref<1x16xf32, #tpu.memory_space<vmem>>, %arg8: memref<1x16xf32, #tpu.memory_space<vmem>>, %arg9: memref<1xf32, #tpu.memory_space<smem>>, %arg10: memref<3x8xf32, #tpu.memory_space<vmem>>) attributes {dimension_semantics = [#tpu.dimension_semantics<parallel>], iteration_bounds = array<i64: 1>, scalar_prefetch = 0 : i64, scratch_operands = 0 : i64, tpu.core_type = #tpu.core_type<tc>, window_params = [{transform_indices = @transform_0, window_bounds = array<i64: 3, 8, 32>}, {transform_indices = @transform_1, window_bounds = array<i64: 8, 32>}, {pipeline_mode = #tpu.pipeline_mode<synchronous>, transform_indices = @transform_2, window_bounds = array<i64: 32, 32>}, {pipeline_mode = #tpu.pipeline_mode<synchronous>, transform_indices = @transform_3, window_bounds = array<i64: 32, 32>}, {pipeline_mode = #tpu.pipeline_mode<synchronous>, transform_indices = @transform_4, window_bounds = array<i64: 1, 32>}, {pipeline_mode = #tpu.pipeline_mode<synchronous>, transform_indices = @transform_5, window_bounds = array<i64: 32, 16>}, {pipeline_mode = #tpu.pipeline_mode<synchronous>, transform_indices = @transform_6, window_bounds = array<i64: 1, 16>}, {pipeline_mode = #tpu.pipeline_mode<synchronous>, transform_indices = @transform_7, window_bounds = array<i64: 1, 16>}, {transform_indices = @transform_8, window_bounds = array<i64: 1>}, {transform_indices = @transform_9, window_bounds = array<i64: 3, 8>}]} {
    %c0 = arith.constant 0 : index
    %c0_0 = arith.constant 0 : index
    %0 = vector.load %arg2[%c0, %c0_0] : memref<8x32xf32, #tpu.memory_space<vmem>>, vector<8x32xf32>
    %c0_1 = arith.constant 0 : index
    %c0_2 = arith.constant 0 : index
    %1 = vector.load %arg4[%c0_1, %c0_2] : memref<32x32xf32, #tpu.memory_space<vmem>>, vector<32x32xf32>
    %cst = arith.constant dense<0.000000e+00> : vector<8x32xf32>
    %2 = tpu.matmul %0, %1, %cst {dimension_numbers = #tpu.dot_dimension_numbers<[1], [0], [0], [1], [0, 0, 1, 1], [], []>} : vector<8x32xf32>, vector<32x32xf32>, vector<8x32xf32> -> vector<8x32xf32>
    %c0_3 = arith.constant 0 : index
    %c0_4 = arith.constant 0 : index
    %3 = vector.load %arg5[%c0_3, %c0_4] : memref<1x32xf32, #tpu.memory_space<vmem>>, vector<1x32xf32>
    %4 = vector.broadcast %3 : vector<1x32xf32> to vector<8x32xf32>
    %5 = arith.addf %2, %4 : vector<8x32xf32>
    %c0_5 = arith.constant 0 : index
    %c0_6 = arith.constant 0 : index
    %c0_7 = arith.constant 0 : index
    %6 = vector.load %arg1[%c0_5, %c0_6, %c0_7] : memref<3x8x32xf32, #tpu.memory_space<vmem>>, vector<3x8x32xf32>
    %7 = vector.shape_cast %6 : vector<3x8x32xf32> to vector<24x32xf32>
    %c0_8 = arith.constant 0 : index
    %c0_9 = arith.constant 0 : index
    %8 = vector.load %arg3[%c0_8, %c0_9] : memref<32x32xf32, #tpu.memory_space<vmem>>, vector<32x32xf32>
    %cst_10 = arith.constant dense<0.000000e+00> : vector<24x32xf32>
    %9 = tpu.matmul %7, %8, %cst_10 {dimension_numbers = #tpu.dot_dimension_numbers<[1], [0], [0], [1], [0, 0, 1, 1], [], []>} : vector<24x32xf32>, vector<32x32xf32>, vector<24x32xf32> -> vector<24x32xf32>
    %10 = vector.shape_cast %9 : vector<24x32xf32> to vector<3x8x32xf32>
    %11 = vector.shape_cast %5 : vector<8x32xf32> to vector<1x8x32xf32>
    %12 = vector.broadcast %11 : vector<1x8x32xf32> to vector<3x8x32xf32>
    %13 = arith.addf %10, %12 : vector<3x8x32xf32>
    %14 = math.tanh %13 : vector<3x8x32xf32>
    %15 = vector.shape_cast %14 : vector<3x8x32xf32> to vector<24x32xf32>
    %c0_11 = arith.constant 0 : index
    %c0_12 = arith.constant 0 : index
    %16 = vector.load %arg6[%c0_11, %c0_12] : memref<32x16xf32, #tpu.memory_space<vmem>>, vector<32x16xf32>
    %cst_13 = arith.constant dense<0.000000e+00> : vector<24x16xf32>
    %17 = tpu.matmul %15, %16, %cst_13 {dimension_numbers = #tpu.dot_dimension_numbers<[1], [0], [0], [1], [0, 0, 1, 1], [], []>} : vector<24x32xf32>, vector<32x16xf32>, vector<24x16xf32> -> vector<24x16xf32>
    %c0_14 = arith.constant 0 : index
    %c0_15 = arith.constant 0 : index
    %18 = vector.load %arg7[%c0_14, %c0_15] : memref<1x16xf32, #tpu.memory_space<vmem>>, vector<1x16xf32>
    %19 = vector.broadcast %18 : vector<1x16xf32> to vector<24x16xf32>
    %20 = arith.addf %17, %19 : vector<24x16xf32>
    %21 = math.tanh %20 : vector<24x16xf32>
    %c0_16 = arith.constant 0 : index
    %c0_17 = arith.constant 0 : index
    %22 = vector.load %arg8[%c0_16, %c0_17] : memref<1x16xf32, #tpu.memory_space<vmem>>, vector<1x16xf32>
    %23 = vector.shape_cast %21 : vector<24x16xf32> to vector<3x8x16xf32>
    %24 = vector.shape_cast %22 : vector<1x16xf32> to vector<1x1x16xf32>
    %25 = vector.broadcast %24 : vector<1x1x16xf32> to vector<3x8x16xf32>
    %26 = arith.mulf %23, %25 : vector<3x8x16xf32>
    %cst_18 = arith.constant dense<0.000000e+00> : vector<3x8xf32>
    %27 = vector.multi_reduction <add>, %26, %cst_18 [2] : vector<3x8x16xf32> to vector<3x8xf32>
    %c0_19 = arith.constant 0 : index
    %28 = memref.load %arg9[%c0_19] : memref<1xf32, #tpu.memory_space<smem>>
    %29 = vector.broadcast %28 : f32 to vector<3x8xf32>
    %30 = arith.addf %27, %29 : vector<3x8xf32>
    %c0_20 = arith.constant 0 : index
    %c0_21 = arith.constant 0 : index
    %31 = vector.load %arg10[%c0_20, %c0_21] : memref<3x8xf32, #tpu.memory_space<vmem>>, vector<3x8xf32>
    tpu.vector_store %arg10[%c0_20, %c0_21], %30 {strides = array<i32>} : memref<3x8xf32, #tpu.memory_space<vmem>>, vector<3x8xf32>,
    return
  }
  func.func @transform_0(%arg0: i32) -> (i32, i32, i32) {
    %c0_i32 = arith.constant 0 : i32
    %c0_i32_0 = arith.constant 0 : i32
    %c0_i32_1 = arith.constant 0 : i32
    return %c0_i32, %arg0, %c0_i32_0 : i32, i32, i32
  }
  func.func @transform_1(%arg0: i32) -> (i32, i32) {
    %c0_i32 = arith.constant 0 : i32
    %c0_i32_0 = arith.constant 0 : i32
    return %arg0, %c0_i32 : i32, i32
  }
  func.func @transform_2(%arg0: i32) -> (i32, i32) {
    %c0_i32 = arith.constant 0 : i32
    %c0_i32_0 = arith.constant 0 : i32
    %c0_i32_1 = arith.constant 0 : i32
    return %c0_i32, %c0_i32_0 : i32, i32
  }
  func.func @transform_3(%arg0: i32) -> (i32, i32) {
    %c0_i32 = arith.constant 0 : i32
    %c0_i32_0 = arith.constant 0 : i32
    %c0_i32_1 = arith.constant 0 : i32
    return %c0_i32, %c0_i32_0 : i32, i32
  }
  func.func @transform_4(%arg0: i32) -> (i32, i32) {
    %c0_i32 = arith.constant 0 : i32
    %c0_i32_0 = arith.constant 0 : i32
    %c0_i32_1 = arith.constant 0 : i32
    return %c0_i32, %c0_i32_0 : i32, i32
  }
  func.func @transform_5(%arg0: i32) -> (i32, i32) {
    %c0_i32 = arith.constant 0 : i32
    %c0_i32_0 = arith.constant 0 : i32
    %c0_i32_1 = arith.constant 0 : i32
    return %c0_i32, %c0_i32_0 : i32, i32
  }
  func.func @transform_6(%arg0: i32) -> (i32, i32) {
    %c0_i32 = arith.constant 0 : i32
    %c0_i32_0 = arith.constant 0 : i32
    %c0_i32_1 = arith.constant 0 : i32
    return %c0_i32, %c0_i32_0 : i32, i32
  }
  func.func @transform_7(%arg0: i32) -> (i32, i32) {
    %c0_i32 = arith.constant 0 : i32
    %c0_i32_0 = arith.constant 0 : i32
    %c0_i32_1 = arith.constant 0 : i32
    return %c0_i32, %c0_i32_0 : i32, i32
  }
  func.func @transform_8(%arg0: i32) -> i32 {
    %c0_i32 = arith.constant 0 : i32
    %c0_i32_0 = arith.constant 0 : i32
    return %c0_i32 : i32
  }
  func.func @transform_9(%arg0: i32) -> (i32, i32) {
    %c0_i32 = arith.constant 0 : i32
    %c0_i32_0 = arith.constant 0 : i32
    return %c0_i32, %arg0 : i32, i32
  }
}

module attributes {stable_mosaic.version = 11 : i64} {
  func.func @_spk_similarity_kernel(%arg0: i32, %arg1: memref<3x8x32xf32, #tpu.memory_space<vmem>>, %arg2: memref<8x32xf32, #tpu.memory_space<vmem>>, %arg3: memref<32x32xf32, #tpu.memory_space<vmem>>, %arg4: memref<32x32xf32, #tpu.memory_space<vmem>>, %arg5: memref<1x32xf32, #tpu.memory_space<vmem>>, %arg6: memref<32x16xf32, #tpu.memory_space<vmem>>, %arg7: memref<1x16xf32, #tpu.memory_space<vmem>>, %arg8: memref<1x16xf32, #tpu.memory_space<vmem>>, %arg9: memref<1xf32, #tpu.memory_space<smem>>, %arg10: memref<3x8xf32, #tpu.memory_space<vmem>>) attributes {dimension_semantics = [#tpu.dimension_semantics<parallel>], iteration_bounds = array<i64: 1>, scalar_prefetch = 0 : i64, scratch_operands = 0 : i64, tpu.core_type = #tpu.core_type<tc>, window_params = [{transform_indices = @transform_0, window_bounds = array<i64: 3, 8, 32>}, {transform_indices = @transform_1, window_bounds = array<i64: 8, 32>}, {pipeline_mode = #tpu.pipeline_mode<synchronous>, transform_indices = @transform_2, window_bounds = array<i64: 32, 32>}, {pipeline_mode = #tpu.pipeline_mode<synchronous>, transform_indices = @transform_3, window_bounds = array<i64: 32, 32>}, {pipeline_mode = #tpu.pipeline_mode<synchronous>, transform_indices = @transform_4, window_bounds = array<i64: 1, 32>}, {pipeline_mode = #tpu.pipeline_mode<synchronous>, transform_indices = @transform_5, window_bounds = array<i64: 32, 16>}, {pipeline_mode = #tpu.pipeline_mode<synchronous>, transform_indices = @transform_6, window_bounds = array<i64: 1, 16>}, {pipeline_mode = #tpu.pipeline_mode<synchronous>, transform_indices = @transform_7, window_bounds = array<i64: 1, 16>}, {transform_indices = @transform_8, window_bounds = array<i64: 1>}, {transform_indices = @transform_9, window_bounds = array<i64: 3, 8>}]} {
    %c0 = arith.constant 0 : index
    %c0_0 = arith.constant 0 : index
    %0 = vector.load %arg2[%c0, %c0_0] : memref<8x32xf32, #tpu.memory_space<vmem>>, vector<8x32xf32>
    %c0_1 = arith.constant 0 : index
    %c0_2 = arith.constant 0 : index
    %1 = vector.load %arg4[%c0_1, %c0_2] : memref<32x32xf32, #tpu.memory_space<vmem>>, vector<32x32xf32>
    %cst = arith.constant dense<0.000000e+00> : vector<8x32xf32>
    %2 = tpu.matmul %0, %1, %cst {dimension_numbers = #tpu.dot_dimension_numbers<[1], [0], [0], [1], [0, 0, 1, 1], [], []>} : vector<8x32xf32>, vector<32x32xf32>, vector<8x32xf32> -> vector<8x32xf32>
    %c0_3 = arith.constant 0 : index
    %c0_4 = arith.constant 0 : index
    %3 = vector.load %arg5[%c0_3, %c0_4] : memref<1x32xf32, #tpu.memory_space<vmem>>, vector<1x32xf32>
    %4 = vector.broadcast %3 : vector<1x32xf32> to vector<8x32xf32>
    %5 = arith.addf %2, %4 : vector<8x32xf32>
    %c0_5 = arith.constant 0 : index
    %c0_6 = arith.constant 0 : index
    %c0_7 = arith.constant 0 : index
    %6 = vector.load %arg1[%c0_5, %c0_6, %c0_7] : memref<3x8x32xf32, #tpu.memory_space<vmem>>, vector<3x8x32xf32>
    %7 = vector.shape_cast %6 : vector<3x8x32xf32> to vector<24x32xf32>
    %c0_8 = arith.constant 0 : index
    %c0_9 = arith.constant 0 : index
    %8 = vector.load %arg3[%c0_8, %c0_9] : memref<32x32xf32, #tpu.memory_space<vmem>>, vector<32x32xf32>
    %cst_10 = arith.constant dense<0.000000e+00> : vector<24x32xf32>
    %9 = tpu.matmul %7, %8, %cst_10 {dimension_numbers = #tpu.dot_dimension_numbers<[1], [0], [0], [1], [0, 0, 1, 1], [], []>} : vector<24x32xf32>, vector<32x32xf32>, vector<24x32xf32> -> vector<24x32xf32>
    %10 = vector.shape_cast %9 : vector<24x32xf32> to vector<3x8x32xf32>
    %11 = vector.shape_cast %5 : vector<8x32xf32> to vector<1x8x32xf32>
    %12 = vector.broadcast %11 : vector<1x8x32xf32> to vector<3x8x32xf32>
    %13 = arith.addf %10, %12 : vector<3x8x32xf32>
    %14 = math.tanh %13 : vector<3x8x32xf32>
    %15 = vector.shape_cast %14 : vector<3x8x32xf32> to vector<24x32xf32>
    %c0_11 = arith.constant 0 : index
    %c0_12 = arith.constant 0 : index
    %16 = vector.load %arg6[%c0_11, %c0_12] : memref<32x16xf32, #tpu.memory_space<vmem>>, vector<32x16xf32>
    %cst_13 = arith.constant dense<0.000000e+00> : vector<24x16xf32>
    %17 = tpu.matmul %15, %16, %cst_13 {dimension_numbers = #tpu.dot_dimension_numbers<[1], [0], [0], [1], [0, 0, 1, 1], [], []>} : vector<24x32xf32>, vector<32x16xf32>, vector<24x16xf32> -> vector<24x16xf32>
    %c0_14 = arith.constant 0 : index
    %c0_15 = arith.constant 0 : index
    %18 = vector.load %arg7[%c0_14, %c0_15] : memref<1x16xf32, #tpu.memory_space<vmem>>, vector<1x16xf32>
    %19 = vector.broadcast %18 : vector<1x16xf32> to vector<24x16xf32>
    %20 = arith.addf %17, %19 : vector<24x16xf32>
    %21 = math.tanh %20 : vector<24x16xf32>
    %c0_16 = arith.constant 0 : index
    %c0_17 = arith.constant 0 : index
    %22 = vector.load %arg8[%c0_16, %c0_17] : memref<1x16xf32, #tpu.memory_space<vmem>>, vector<1x16xf32>
    %23 = vector.shape_cast %21 : vector<24x16xf32> to vector<3x8x16xf32>
    %24 = vector.shape_cast %22 : vector<1x16xf32> to vector<1x1x16xf32>
    %25 = vector.broadcast %24 : vector<1x1x16xf32> to vector<3x8x16xf32>
    %26 = arith.mulf %23, %25 : vector<3x8x16xf32>
    %cst_18 = arith.constant dense<0.000000e+00> : vector<3x8xf32>
    %27 = vector.multi_reduction <add>, %26, %cst_18 [2] : vector<3x8x16xf32> to vector<3x8xf32>
    %c0_19 = arith.constant 0 : index
    %28 = memref.load %arg9[%c0_19] : memref<1xf32, #tpu.memory_space<smem>>
    %29 = vector.broadcast %28 : f32 to vector<3x8xf32>
    %30 = arith.addf %27, %29 : vector<3x8xf32>
    %c0_20 = arith.constant 0 : index
    %c0_21 = arith.constant 0 : index
    %31 = vector.load %arg10[%c0_20, %c0_21] : memref<3x8xf32, #tpu.memory_space<vmem>>, vector<3x8xf32>
    tpu.vector_store %arg10[%c0_20, %c0_21], %30 {strides = array<i32>} : memref<3x8xf32, #tpu.memory_space<vmem>>, vector<3x8xf32>,
    return
  }
  func.func @transform_0(%arg0: i32) -> (i32, i32, i32) {
    %c0_i32 = arith.constant 0 : i32
    %c0_i32_0 = arith.constant 0 : i32
    %c0_i32_1 = arith.constant 0 : i32
    return %c0_i32, %arg0, %c0_i32_0 : i32, i32, i32
  }
  func.func @transform_1(%arg0: i32) -> (i32, i32) {
    %c0_i32 = arith.constant 0 : i32
    %c0_i32_0 = arith.constant 0 : i32
    return %arg0, %c0_i32 : i32, i32
  }
  func.func @transform_2(%arg0: i32) -> (i32, i32) {
    %c0_i32 = arith.constant 0 : i32
    %c0_i32_0 = arith.constant 0 : i32
    %c0_i32_1 = arith.constant 0 : i32
    return %c0_i32, %c0_i32_0 : i32, i32
  }
  func.func @transform_3(%arg0: i32) -> (i32, i32) {
    %c0_i32 = arith.constant 0 : i32
    %c0_i32_0 = arith.constant 0 : i32
    %c0_i32_1 = arith.constant 0 : i32
    return %c0_i32, %c0_i32_0 : i32, i32
  }
  func.func @transform_4(%arg0: i32) -> (i32, i32) {
    %c0_i32 = arith.constant 0 : i32
    %c0_i32_0 = arith.constant 0 : i32
    %c0_i32_1 = arith.constant 0 : i32
    return %c0_i32, %c0_i32_0 : i32, i32
  }
  func.func @transform_5(%arg0: i32) -> (i32, i32) {
    %c0_i32 = arith.constant 0 : i32
    %c0_i32_0 = arith.constant 0 : i32
    %c0_i32_1 = arith.constant 0 : i32
    return %c0_i32, %c0_i32_0 : i32, i32
  }
  func.func @transform_6(%arg0: i32) -> (i32, i32) {
    %c0_i32 = arith.constant 0 : i32
    %c0_i32_0 = arith.constant 0 : i32
    %c0_i32_1 = arith.constant 0 : i32
    return %c0_i32, %c0_i32_0 : i32, i32
  }
  func.func @transform_7(%arg0: i32) -> (i32, i32) {
    %c0_i32 = arith.constant 0 : i32
    %c0_i32_0 = arith.constant 0 : i32
    %c0_i32_1 = arith.constant 0 : i32
    return %c0_i32, %c0_i32_0 : i32, i32
  }
  func.func @transform_8(%arg0: i32) -> i32 {
    %c0_i32 = arith.constant 0 : i32
    %c0_i32_0 = arith.constant 0 : i32
    return %c0_i32 : i32
  }
  func.func @transform_9(%arg0: i32) -> (i32, i32) {
    %c0_i32 = arith.constant 0 : i32
    %c0_i32_0 = arith.constant 0 : i32
    return %c0_i32, %arg0 : i32, i32
  }
}

</mosaic_0001>

<llo_original>
// kernel: tpu_custom_call.1
$region0: #{tpu_custom_call.1}
  #allocation0 [shape = 'u32[]', space=smem, size = 0x4, offset = 0x4, fixed_abs, tag = 'smem constant byte address 0x4 - core index']
  #allocation1 [shape = 'u32[144,128]{1,0:T(1,128)}', space=vmem, size = 0x12000, scoped, tag = 'internal scratch']
  #allocation2 [shape = 'f32[1]{0:T(128)S(6)}', space=smem, size = 0x200, scoped, tag = 'scoped memory for tpu_custom_call.1']
  %s0 = inlined_call_operand.vmem [shape: f32[3,8,32], index: 0, kind: input, shape index: {}]
  %s1 = inlined_call_operand.hbm [shape: f32[8,32], index: 1, kind: input, shape index: {}]
  %s2 = inlined_call_operand.vmem [shape: f32[32,32], index: 2, kind: input, shape index: {}]
  %s3 = inlined_call_operand.hbm [shape: f32[32,32], index: 3, kind: input, shape index: {}]
  %s4 = inlined_call_operand.vmem [shape: f32[1,32], index: 4, kind: input, shape index: {}]
  %s5 = inlined_call_operand.vmem [shape: f32[32,16], index: 5, kind: input, shape index: {}]
  %s6 = inlined_call_operand.vmem [shape: f32[1,16], index: 6, kind: input, shape index: {}]
  %s7 = inlined_call_operand.vmem [shape: f32[1,16], index: 7, kind: input, shape index: {}]
  %s8 = inlined_call_operand.<no memory space> [shape: f32[1], index: 8, kind: input, shape index: {}]
  %s9 = inlined_call_operand.hbm [shape: f32[3,8], index: 9, kind: output, shape index: {}]
  %s10 = sld [smem:[#allocation0]]
  $region54: #{tpu_custom_call.1} parent=0
    _
  %s12 = ssub.s32 1, %s10
  %s13 = scalar_select 0, %s12, %s10
  %14 = sst [smem:[#allocation2]] %s8
  $region1: #{tpu_custom_call.1} parent=0
    #allocation3 [shape = 'u8[4096]{0}', space=vmem, size = 0x1000, scoped, tag = 'input window, operand 1, single buffered']
    #allocation4 [shape = 's32[1]{0}', space=sflag, size = 0x4, scoped, tag = 'scoped memory for tpu_custom_call.1']
    #allocation5 [shape = 's32[1]{0}', space=sflag, size = 0x4, scoped, tag = 'scoped memory for tpu_custom_call.1']
    #allocation6 [shape = 'u8[16384]{0}', space=vmem, size = 0x4000, scoped, tag = 'input window, operand 3, single buffered']
    #allocation7 [shape = 's32[1]{0}', space=sflag, size = 0x4, scoped, tag = 'scoped memory for tpu_custom_call.1']
    #allocation8 [shape = 'u8[2048]{0}', space=vmem, size = 0x800, scoped, tag = 'output window, operand 0, single buffered']
    %15 = vsyncpa [#allocation4], 0
    %16 = vsyncpa [#allocation7], 0
    %17 = vsyncpa [#allocation5], 0
    // Predicated region
    $region2: #{tpu_custom_call.1} parent=1 // pred_check
      _
    $region3: #{tpu_custom_call.1} parent=1 // pred_check_branch
      %19 = sbr.rel (0) target = $region5
    $region4: #{tpu_custom_call.1} parent=1 // pred_region
      _
    $region5: #{tpu_custom_call.1} parent=1 // pred_fallthru
      _
    // Predicated region
    $region6: #{tpu_custom_call.1} parent=1 // pred_check
      _
    $region7: #{tpu_custom_call.1} parent=1 // pred_check_branch
      %21 = sbr.rel (0) target = $region9
    $region8: #{tpu_custom_call.1} parent=1 // pred_region
      %s23 = ssub.s32 128, 128
      %24 = vsyncadd [#allocation4], %s23
      %s26 = sshll.u32 [#allocation3], 4
      %s27 = int_to_ptr.vmem [resolvable:$true] %s26
      %29 = dma.hbm_to_vmem [thread:$0]  %s1, 128, %s27, [#allocation4]
    $region9: #{tpu_custom_call.1} parent=1 // pred_fallthru
      _
    // Predicated region
    $region10: #{tpu_custom_call.1} parent=1 // pred_check
      _
    $region11: #{tpu_custom_call.1} parent=1 // pred_check_branch
      %31 = sbr.rel (0) target = $region13
    $region12: #{tpu_custom_call.1} parent=1 // pred_region
      _
    $region13: #{tpu_custom_call.1} parent=1 // pred_fallthru
      _
    // Predicated region
    $region14: #{tpu_custom_call.1} parent=1 // pred_check
      _
    $region15: #{tpu_custom_call.1} parent=1 // pred_check_branch
      %33 = sbr.rel (0) target = $region17
    $region16: #{tpu_custom_call.1} parent=1 // pred_region
      %s35 = ssub.s32 512, 512
      %36 = vsyncadd [#allocation7], %s35
      %s37 = sshll.u32 [#allocation6], 4
      %s38 = int_to_ptr.vmem [resolvable:$true] %s37
      %43 = dma.hbm_to_vmem [thread:$0]  %s3, 512, %s38, [#allocation7], 128, 128, 8
    $region17: #{tpu_custom_call.1} parent=1 // pred_fallthru
      _
    // Predicated region
    $region18: #{tpu_custom_call.1} parent=1 // pred_check
      _
    $region19: #{tpu_custom_call.1} parent=1 // pred_check_branch
      %45 = sbr.rel (0) target = $region21
    $region20: #{tpu_custom_call.1} parent=1 // pred_region
      _
    $region21: #{tpu_custom_call.1} parent=1 // pred_fallthru
      _
    // Predicated region
    $region22: #{tpu_custom_call.1} parent=1 // pred_check
      _
    $region23: #{tpu_custom_call.1} parent=1 // pred_check_branch
      %47 = sbr.rel (0) target = $region25
    $region24: #{tpu_custom_call.1} parent=1 // pred_region
      _
    $region25: #{tpu_custom_call.1} parent=1 // pred_fallthru
      _
    // Predicated region
    $region26: #{tpu_custom_call.1} parent=1 // pred_check
      _
    $region27: #{tpu_custom_call.1} parent=1 // pred_check_branch
      %49 = sbr.rel (0) target = $region29
    $region28: #{tpu_custom_call.1} parent=1 // pred_region
      _
    $region29: #{tpu_custom_call.1} parent=1 // pred_fallthru
      _
    // Predicated region
    $region30: #{tpu_custom_call.1} parent=1 // pred_check
      _
    $region31: #{tpu_custom_call.1} parent=1 // pred_check_branch
      %51 = sbr.rel (0) target = $region33
    $region32: #{tpu_custom_call.1} parent=1 // pred_region
      _
    $region33: #{tpu_custom_call.1} parent=1 // pred_fallthru
      _
    // Predicated region
    $region34: #{tpu_custom_call.1} parent=1 // pred_check
      _
    $region35: #{tpu_custom_call.1} parent=1 // pred_check_branch
      %53 = sbr.rel (0) target = $region37
    $region36: #{tpu_custom_call.1} parent=1 // pred_region
      _
    $region37: #{tpu_custom_call.1} parent=1 // pred_fallthru
      _
    // Predicated region
    $region38: #{tpu_custom_call.1} parent=1 // pred_check
      _
    $region39: #{tpu_custom_call.1} parent=1 // pred_check_branch
      %55 = sbr.rel (0) target = $region41
    $region40: #{tpu_custom_call.1} parent=1 // pred_region
      %56 = dma.done [#allocation4], 128
    $region41: #{tpu_custom_call.1} parent=1 // pred_fallthru
      _
    // Predicated region
    $region42: #{tpu_custom_call.1} parent=1 // pred_check
      _
    $region43: #{tpu_custom_call.1} parent=1 // pred_check_branch
      %58 = sbr.rel (0) target = $region45
    $region44: #{tpu_custom_call.1} parent=1 // pred_region
      %59 = dma.done [#allocation7], 512
    $region45: #{tpu_custom_call.1} parent=1 // pred_fallthru
      _
    %v60 = vld [vmem:[#allocation3] sm:$0xff]
    %v61 = vld [vmem:[#allocation6] sm:$0xff]
    %v62 = vld [vmem:[#allocation6 + $0x8] sm:$0xff]
    %v63 = vld [vmem:[#allocation6 + $0x10] sm:$0xff]
    %v64 = vld [vmem:[#allocation6 + $0x18] sm:$0xff]
    %v65 = vld [vmem:[%s4] sm:$0x1]
    %v67 = vlaneseq
    %v68 = vshrl.u32 %v67, 7
    %v69 = vsub.s32 0, %v68
    %v70 = vrot.slane %v65, %v69
    %vm72 = vcmask 261120
    %v74 = vsel %vm72, %v60, 0
    %76 = vmatprep.subr.mxu0 0.0
    %77 = vmatpush1.msra.mxu0 %v61
    %78 = vmatprep.subr.mxu0 0.0
    %79 = vmatpush1.msra.mxu0 %v62
    %80 = vmatprep.subr.mxu0 0.0
    %81 = vmatpush1.msra.mxu0 %v63
    %82 = vmatprep.subr.mxu0 0.0
    %83 = vmatpush1.msra.mxu0 %v64
    %84 = vmatprep.subr.mxu0 0.0
    %85 = vmatpush1.msra.mxu0 0.0
    %86 = vmatprep.subr.mxu0 0.0
    %87 = vmatpush1.msra.mxu0 0.0
    %88 = vmatprep.subr.mxu0 0.0
    %89 = vmatpush1.msra.mxu0 0.0
    %90 = vmatprep.subr.mxu0 0.0
    %91 = vmatpush1.msra.mxu0 0.0
    %92 = vmatprep.subr.mxu0 0.0
    %93 = vmatpush1.msra.mxu0 0.0
    %94 = vmatprep.subr.mxu0 0.0
    %95 = vmatpush1.msra.mxu0 0.0
    %96 = vmatprep.subr.mxu0 0.0
    %97 = vmatpush1.msra.mxu0 0.0
    %98 = vmatprep.subr.mxu0 0.0
    %99 = vmatpush1.msra.mxu0 0.0
    %100 = vmatprep.subr.mxu0 0.0
    %101 = vmatpush1.msra.mxu0 0.0
    %102 = vmatprep.subr.mxu0 0.0
    %103 = vmatpush1.msra.mxu0 0.0
    %104 = vmatprep.subr.mxu0 0.0
    %105 = vmatpush1.msra.mxu0 0.0
    %106 = vmatprep.subr.mxu0 0.0
    %107 = vmatpush1.msra.mxu0 0.0
    %108 = vmatprep.subr.mxu0 0.0
    %109 = vmatpush1.msra.mxu0 0.0
    %110 = vmatprep.subr.mxu0 0.0
    %111 = vmatpush1.msra.mxu0 0.0
    %112 = vmatprep.subr.mxu0 0.0
    %113 = vmatpush1.msra.mxu0 0.0
    %114 = vmatprep.subr.mxu0 0.0
    %115 = vmatpush1.msra.mxu0 0.0
    %116 = vmatprep.subr.mxu0 0.0
    %117 = vmatpush1.msra.mxu0 0.0
    %118 = vmatprep.subr.mxu0 0.0
    %119 = vmatpush1.msra.mxu0 0.0
    %120 = vmatprep.subr.mxu0 0.0
    %121 = vmatpush1.msra.mxu0 0.0
    %122 = vmatprep.subr.mxu0 0.0
    %123 = vmatpush1.msra.mxu0 0.0
    %124 = vmatprep.subr.mxu0 0.0
    %125 = vmatpush1.msra.mxu0 0.0
    %126 = vmatprep.subr.mxu0 0.0
    %127 = vmatpush1.msra.mxu0 0.0
    %128 = vmatprep.subr.mxu0 0.0
    %129 = vmatpush1.msra.mxu0 0.0
    %130 = vmatprep.subr.mxu0 0.0
    %131 = vmatpush1.msra.mxu0 0.0
    %132 = vmatprep.subr.mxu0 0.0
    %133 = vmatpush1.msra.mxu0 0.0
    %134 = vmatprep.subr.mxu0 0.0
    %135 = vmatpush1.msra.mxu0 0.0
    %136 = vmatprep.subr.mxu0 0.0
    %137 = vmatpush1.msra.mxu0 0.0
    %138 = vmatprep.subr.mxu0 0.0
    %139 = vmatpush1.msra.mxu0 0.0
    %140 = vmatprep.mubr.f32.mxu0 0.0
    %141 = vmatmul.mubr.f32.gmra.mrb[0].mxu0 %v74
    %v142 = vpop.f32.mrb[0].mxu0
    %v143 = vadd.f32 %v70, %v142
    %v144 = vpop.f32.mrb[0].mxu0
    %145 = vdwg.mxu0
    %v146 = vld [vmem:[%s0] sm:$0xff]
    %v147 = vld [vmem:[%s0 + $0x8] sm:$0xff]
    %v148 = vld [vmem:[%s0 + $0x10] sm:$0xff]
    %v149 = vld [vmem:[%s2] sm:$0xff]
    %v150 = vld [vmem:[%s2 + $0x8] sm:$0xff]
    %v151 = vld [vmem:[%s2 + $0x10] sm:$0xff]
    %v152 = vld [vmem:[%s2 + $0x18] sm:$0xff]
    %v154 = vsel %vm72, %v146, 0
    %v157 = vsel %vm72, %v147, 0
    %v160 = vsel %vm72, %v148, 0
    %162 = vmatprep.subr.mxu0 0.0
    %163 = vmatpush1.msra.mxu0 %v149
    %164 = vmatprep.subr.mxu0 0.0
    %165 = vmatpush1.msra.mxu0 %v150
    %166 = vmatprep.subr.mxu0 0.0
    %167 = vmatpush1.msra.mxu0 %v151
    %168 = vmatprep.subr.mxu0 0.0
    %169 = vmatpush1.msra.mxu0 %v152
    %170 = vmatprep.subr.mxu0 0.0
    %171 = vmatpush1.msra.mxu0 0.0
    %172 = vmatprep.subr.mxu0 0.0
    %173 = vmatpush1.msra.mxu0 0.0
    %174 = vmatprep.subr.mxu0 0.0
    %175 = vmatpush1.msra.mxu0 0.0
    %176 = vmatprep.subr.mxu0 0.0
    %177 = vmatpush1.msra.mxu0 0.0
    %178 = vmatprep.subr.mxu0 0.0
    %179 = vmatpush1.msra.mxu0 0.0
    %180 = vmatprep.subr.mxu0 0.0
    %181 = vmatpush1.msra.mxu0 0.0
    %182 = vmatprep.subr.mxu0 0.0
    %183 = vmatpush1.msra.mxu0 0.0
    %184 = vmatprep.subr.mxu0 0.0
    %185 = vmatpush1.msra.mxu0 0.0
    %186 = vmatprep.subr.mxu0 0.0
    %187 = vmatpush1.msra.mxu0 0.0
    %188 = vmatprep.subr.mxu0 0.0
    %189 = vmatpush1.msra.mxu0 0.0
    %190 = vmatprep.subr.mxu0 0.0
    %191 = vmatpush1.msra.mxu0 0.0
    %192 = vmatprep.subr.mxu0 0.0
    %193 = vmatpush1.msra.mxu0 0.0
    %194 = vmatprep.subr.mxu0 0.0
    %195 = vmatpush1.msra.mxu0 0.0
    %196 = vmatprep.subr.mxu0 0.0
    %197 = vmatpush1.msra.mxu0 0.0
    %198 = vmatprep.subr.mxu0 0.0
    %199 = vmatpush1.msra.mxu0 0.0
    %200 = vmatprep.subr.mxu0 0.0
    %201 = vmatpush1.msra.mxu0 0.0
    %202 = vmatprep.subr.mxu0 0.0
    %203 = vmatpush1.msra.mxu0 0.0
    %204 = vmatprep.subr.mxu0 0.0
    %205 = vmatpush1.msra.mxu0 0.0
    %206 = vmatprep.subr.mxu0 0.0
    %207 = vmatpush1.msra.mxu0 0.0
    %208 = vmatprep.subr.mxu0 0.0
    %209 = vmatpush1.msra.mxu0 0.0
    %210 = vmatprep.subr.mxu0 0.0
    %211 = vmatpush1.msra.mxu0 0.0
    %212 = vmatprep.subr.mxu0 0.0
    %213 = vmatpush1.msra.mxu0 0.0
    %214 = vmatprep.subr.mxu0 0.0
    %215 = vmatpush1.msra.mxu0 0.0
    %216 = vmatprep.subr.mxu0 0.0
    %217 = vmatpush1.msra.mxu0 0.0
    %218 = vmatprep.subr.mxu0 0.0
    %219 = vmatpush1.msra.mxu0 0.0
    %220 = vmatprep.subr.mxu0 0.0
    %221 = vmatpush1.msra.mxu0 0.0
    %222 = vmatprep.subr.mxu0 0.0
    %223 = vmatpush1.msra.mxu0 0.0
    %224 = vmatprep.subr.mxu0 0.0
    %225 = vmatpush1.msra.mxu0 0.0
    %226 = vmatprep.mubr.f32.mxu0 0.0
    %227 = vmatmul.mubr.f32.gmra.mrb[0].mxu0 %v154
    %v228 = vpop.f32.mrb[0].mxu0
    %v229 = vadd.f32 0.0, %v228
    %v230 = vpop.f32.mrb[0].mxu0
    %231 = vmatprep.mubr.f32.mxu0 0.0
    %232 = vmatmul.mubr.f32.gmra.mrb[0].mxu0 %v157
    %v233 = vpop.f32.mrb[0].mxu0
    %v234 = vadd.f32 0.0, %v233
    %v235 = vpop.f32.mrb[0].mxu0
    %236 = vmatprep.mubr.f32.mxu0 0.0
    %237 = vmatmul.mubr.f32.gmra.mrb[0].mxu0 %v160
    %v238 = vpop.f32.mrb[0].mxu0
    %v239 = vadd.f32 0.0, %v238
    %v240 = vpop.f32.mrb[0].mxu0
    %241 = vdwg.mxu0
    %v242 = vadd.f32 %v229, %v143
    %v243 = vadd.f32 %v234, %v143
    %v244 = vadd.f32 %v239, %v143
    %v245 = vtanh.pop %v242
    %v246 = vtanh.pop %v243
    %v247 = vtanh.pop %v244
    %v248 = vld [vmem:[%s5] sm:$0xff]
    %v249 = vld [vmem:[%s5 + $0x8] sm:$0xff]
    %v250 = vld [vmem:[%s5 + $0x10] sm:$0xff]
    %v251 = vld [vmem:[%s5 + $0x18] sm:$0xff]
    %v252 = vld [vmem:[%s6] sm:$0x1]
    %v254 = vlaneseq
    %v255 = vshrl.u32 %v254, 7
    %v256 = vsub.s32 0, %v255
    %v257 = vrot.slane %v252, %v256
    %v260 = vsel %vm72, %v245, 0
    %v263 = vsel %vm72, %v246, 0
    %v266 = vsel %vm72, %v247, 0
    %268 = vmatprep.subr.mxu0 0.0
    %269 = vmatpush1.msra.mxu0 %v248
    %270 = vmatprep.subr.mxu0 0.0
    %271 = vmatpush1.msra.mxu0 %v249
    %272 = vmatprep.subr.mxu0 0.0
    %273 = vmatpush1.msra.mxu0 %v250
    %274 = vmatprep.subr.mxu0 0.0
    %275 = vmatpush1.msra.mxu0 %v251
    %276 = vmatprep.subr.mxu0 0.0
    %277 = vmatpush1.msra.mxu0 0.0
    %278 = vmatprep.subr.mxu0 0.0
    %279 = vmatpush1.msra.mxu0 0.0
    %280 = vmatprep.subr.mxu0 0.0
    %281 = vmatpush1.msra.mxu0 0.0
    %282 = vmatprep.subr.mxu0 0.0
    %283 = vmatpush1.msra.mxu0 0.0
    %284 = vmatprep.subr.mxu0 0.0
    %285 = vmatpush1.msra.mxu0 0.0
    %286 = vmatprep.subr.mxu0 0.0
    %287 = vmatpush1.msra.mxu0 0.0
    %288 = vmatprep.subr.mxu0 0.0
    %289 = vmatpush1.msra.mxu0 0.0
    %290 = vmatprep.subr.mxu0 0.0
    %291 = vmatpush1.msra.mxu0 0.0
    %292 = vmatprep.subr.mxu0 0.0
    %293 = vmatpush1.msra.mxu0 0.0
    %294 = vmatprep.subr.mxu0 0.0
    %295 = vmatpush1.msra.mxu0 0.0
    %296 = vmatprep.subr.mxu0 0.0
    %297 = vmatpush1.msra.mxu0 0.0
    %298 = vmatprep.subr.mxu0 0.0
    %299 = vmatpush1.msra.mxu0 0.0
    %300 = vmatprep.subr.mxu0 0.0
    %301 = vmatpush1.msra.mxu0 0.0
    %302 = vmatprep.subr.mxu0 0.0
    %303 = vmatpush1.msra.mxu0 0.0
    %304 = vmatprep.subr.mxu0 0.0
    %305 = vmatpush1.msra.mxu0 0.0
    %306 = vmatprep.subr.mxu0 0.0
    %307 = vmatpush1.msra.mxu0 0.0
    %308 = vmatprep.subr.mxu0 0.0
    %309 = vmatpush1.msra.mxu0 0.0
    %310 = vmatprep.subr.mxu0 0.0
    %311 = vmatpush1.msra.mxu0 0.0
    %312 = vmatprep.subr.mxu0 0.0
    %313 = vmatpush1.msra.mxu0 0.0
    %314 = vmatprep.subr.mxu0 0.0
    %315 = vmatpush1.msra.mxu0 0.0
    %316 = vmatprep.subr.mxu0 0.0
    %317 = vmatpush1.msra.mxu0 0.0
    %318 = vmatprep.subr.mxu0 0.0
    %319 = vmatpush1.msra.mxu0 0.0
    %320 = vmatprep.subr.mxu0 0.0
    %321 = vmatpush1.msra.mxu0 0.0
    %322 = vmatprep.subr.mxu0 0.0
    %323 = vmatpush1.msra.mxu0 0.0
    %324 = vmatprep.subr.mxu0 0.0
    %325 = vmatpush1.msra.mxu0 0.0
    %326 = vmatprep.subr.mxu0 0.0
    %327 = vmatpush1.msra.mxu0 0.0
    %328 = vmatprep.subr.mxu0 0.0
    %329 = vmatpush1.msra.mxu0 0.0
    %330 = vmatprep.subr.mxu0 0.0
    %331 = vmatpush1.msra.mxu0 0.0
    %332 = vmatprep.mubr.f32.mxu0 0.0
    %333 = vmatmul.mubr.f32.gmra.mrb[0].mxu0 %v260
    %v334 = vpop.f32.mrb[0].mxu0
    %v335 = vadd.f32 %v257, %v334
    %v336 = vpop.f32.mrb[0].mxu0
    %337 = vmatprep.mubr.f32.mxu0 0.0
    %338 = vmatmul.mubr.f32.gmra.mrb[0].mxu0 %v263
    %v339 = vpop.f32.mrb[0].mxu0
    %v340 = vadd.f32 %v257, %v339
    %v341 = vpop.f32.mrb[0].mxu0
    %342 = vmatprep.mubr.f32.mxu0 0.0
    %343 = vmatmul.mubr.f32.gmra.mrb[0].mxu0 %v266
    %v344 = vpop.f32.mrb[0].mxu0
    %v345 = vadd.f32 %v257, %v344
    %v346 = vpop.f32.mrb[0].mxu0
    %347 = vdwg.mxu0
    %v348 = vtanh.pop %v335
    %v349 = vtanh.pop %v340
    %v350 = vtanh.pop %v345
    %v351 = vld [vmem:[%s7] sm:$0x1]
    %v353 = vlaneseq
    %v354 = vshrl.u32 %v353, 7
    %v355 = vsub.s32 0, %v354
    %v356 = vrot.slane %v351, %v355
    %v358 = vmul.f32 %v348, %v356
    %v359 = vmul.f32 %v349, %v356
    %v360 = vmul.f32 %v350, %v356
    %vm361 = vcmask 130048
    %v362 = vsel %vm361, %v358, 0.0
    %363 = vadd.xlane.f32.xlu0 %v362
    %v364 = vpop.xlane.xlu0 %363
    %v365 = vsel %vm361, %v359, 0.0
    %366 = vadd.xlane.f32.xlu0 %v365
    %v367 = vpop.xlane.xlu0 %366
    %v368 = vsel %vm361, %v360, 0.0
    %369 = vadd.xlane.f32.xlu0 %v368
    %v370 = vpop.xlane.xlu0 %369
    %s371 = sld [smem:[#allocation2]]
    %v372 = vstv %s371
    %v373 = vadd.f32 %v364, %v372
    %v374 = vadd.f32 %v367, %v372
    %v375 = vadd.f32 %v370, %v372
    %v379 = vlaneseq
    %v380 = vand.u32 %v379, 127
    %v381 = vlaneseq
    %v382 = vshrl.u32 %v381, 7
    %v383 = vsub.s32 %v380, %v382
    %v384 = vrot.slane %v373, %v383
    %v385 = vlaneseq
    %v386 = vshrl.u32 %v385, 7
    %v387 = vsub.s32 %v380, %v386
    %v388 = vrot.slane %v374, %v387
    %v389 = vlaneseq
    %v390 = vshrl.u32 %v389, 7
    %v391 = vsub.s32 %v380, %v390
    %v392 = vrot.slane %v375, %v391
    %vm393 = vcmask 1041409
    %v394 = vsel %vm393, %v388, %v384
    %vm395 = vcmask 1042434
    %v396 = vsel %vm395, %v392, %v394
    %vm398 = vcmask 59392
    %399 = vst.msk [vmem:[#allocation8] sm:$0x7] %vm398, %v396
    // Predicated region
    $region46: #{tpu_custom_call.1} parent=1 // pred_check
      _
    $region47: #{tpu_custom_call.1} parent=1 // pred_check_branch
      %401 = sbr.rel (0) target = $region49
    $region48: #{tpu_custom_call.1} parent=1 // pred_region
      %s403 = ssub.s32 64, 64
      %404 = vsyncadd [#allocation5], %s403
      %s406 = sshll.u32 [#allocation8], 4
      %s407 = int_to_ptr.vmem [resolvable:$true] %s406
      %409 = dma.vmem_to_hbm [thread:$0]  %s407, 64, %s9, [#allocation5]
    $region49: #{tpu_custom_call.1} parent=1 // pred_fallthru
      _
    // Predicated region
    $region50: #{tpu_custom_call.1} parent=1 // pred_check
      _
    $region51: #{tpu_custom_call.1} parent=1 // pred_check_branch
      %411 = sbr.rel (0) target = $region53
    $region52: #{tpu_custom_call.1} parent=1 // pred_region
      %412 = dma.done [#allocation5], 64
    $region53: #{tpu_custom_call.1} parent=1 // pred_fallthru
      _
    %413 = vsyncpa [#allocation4], 1
    %414 = vsyncpa [#allocation7], 1
    %415 = vsyncpa [#allocation5], 1

// kernel: tpu_custom_call.1
$region0: #{tpu_custom_call.1}
  #allocation0 [shape = 'u32[]', space=smem, size = 0x4, offset = 0x4, fixed_abs, tag = 'smem constant byte address 0x4 - core index']
  #allocation1 [shape = 'u32[144,128]{1,0:T(1,128)}', space=vmem, size = 0x12000, scoped, tag = 'internal scratch']
  #allocation2 [shape = 'f32[1]{0:T(128)S(6)}', space=smem, size = 0x200, scoped, tag = 'scoped memory for tpu_custom_call.1']
  %s0 = inlined_call_operand.vmem [shape: f32[3,8,32], index: 0, kind: input, shape index: {}]
  %s1 = inlined_call_operand.hbm [shape: f32[8,32], index: 1, kind: input, shape index: {}]
  %s2 = inlined_call_operand.vmem [shape: f32[32,32], index: 2, kind: input, shape index: {}]
  %s3 = inlined_call_operand.hbm [shape: f32[32,32], index: 3, kind: input, shape index: {}]
  %s4 = inlined_call_operand.vmem [shape: f32[1,32], index: 4, kind: input, shape index: {}]
  %s5 = inlined_call_operand.vmem [shape: f32[32,16], index: 5, kind: input, shape index: {}]
  %s6 = inlined_call_operand.vmem [shape: f32[1,16], index: 6, kind: input, shape index: {}]
  %s7 = inlined_call_operand.vmem [shape: f32[1,16], index: 7, kind: input, shape index: {}]
  %s8 = inlined_call_operand.<no memory space> [shape: f32[1], index: 8, kind: input, shape index: {}]
  %s9 = inlined_call_operand.hbm [shape: f32[3,8], index: 9, kind: output, shape index: {}]
  %s10 = sld [smem:[#allocation0]]
  $region54: #{tpu_custom_call.1} parent=0
    _
  %s12 = ssub.s32 1, %s10
  %s13 = scalar_select 0, %s12, %s10
  %14 = sst [smem:[#allocation2]] %s8
  $region1: #{tpu_custom_call.1} parent=0
    #allocation3 [shape = 'u8[4096]{0}', space=vmem, size = 0x1000, scoped, tag = 'input window, operand 1, single buffered']
    #allocation4 [shape = 's32[1]{0}', space=sflag, size = 0x4, scoped, tag = 'scoped memory for tpu_custom_call.1']
    #allocation5 [shape = 's32[1]{0}', space=sflag, size = 0x4, scoped, tag = 'scoped memory for tpu_custom_call.1']
    #allocation6 [shape = 'u8[16384]{0}', space=vmem, size = 0x4000, scoped, tag = 'input window, operand 3, single buffered']
    #allocation7 [shape = 's32[1]{0}', space=sflag, size = 0x4, scoped, tag = 'scoped memory for tpu_custom_call.1']
    #allocation8 [shape = 'u8[2048]{0}', space=vmem, size = 0x800, scoped, tag = 'output window, operand 0, single buffered']
    %15 = vsyncpa [#allocation4], 0
    %16 = vsyncpa [#allocation7], 0
    %17 = vsyncpa [#allocation5], 0
    // Predicated region
    $region2: #{tpu_custom_call.1} parent=1 // pred_check
      _
    $region3: #{tpu_custom_call.1} parent=1 // pred_check_branch
      %19 = sbr.rel (0) target = $region5
    $region4: #{tpu_custom_call.1} parent=1 // pred_region
      _
    $region5: #{tpu_custom_call.1} parent=1 // pred_fallthru
      _
    // Predicated region
    $region6: #{tpu_custom_call.1} parent=1 // pred_check
      _
    $region7: #{tpu_custom_call.1} parent=1 // pred_check_branch
      %21 = sbr.rel (0) target = $region9
    $region8: #{tpu_custom_call.1} parent=1 // pred_region
      %s23 = ssub.s32 128, 128
      %24 = vsyncadd [#allocation4], %s23
      %s26 = sshll.u32 [#allocation3], 4
      %s27 = int_to_ptr.vmem [resolvable:$true] %s26
      %29 = dma.hbm_to_vmem [thread:$0]  %s1, 128, %s27, [#allocation4]
    $region9: #{tpu_custom_call.1} parent=1 // pred_fallthru
      _
    // Predicated region
    $region10: #{tpu_custom_call.1} parent=1 // pred_check
      _
    $region11: #{tpu_custom_call.1} parent=1 // pred_check_branch
      %31 = sbr.rel (0) target = $region13
    $region12: #{tpu_custom_call.1} parent=1 // pred_region
      _
    $region13: #{tpu_custom_call.1} parent=1 // pred_fallthru
      _
    // Predicated region
    $region14: #{tpu_custom_call.1} parent=1 // pred_check
      _
    $region15: #{tpu_custom_call.1} parent=1 // pred_check_branch
      %33 = sbr.rel (0) target = $region17
    $region16: #{tpu_custom_call.1} parent=1 // pred_region
      %s35 = ssub.s32 512, 512
      %36 = vsyncadd [#allocation7], %s35
      %s37 = sshll.u32 [#allocation6], 4
      %s38 = int_to_ptr.vmem [resolvable:$true] %s37
      %43 = dma.hbm_to_vmem [thread:$0]  %s3, 512, %s38, [#allocation7], 128, 128, 8
    $region17: #{tpu_custom_call.1} parent=1 // pred_fallthru
      _
    // Predicated region
    $region18: #{tpu_custom_call.1} parent=1 // pred_check
      _
    $region19: #{tpu_custom_call.1} parent=1 // pred_check_branch
      %45 = sbr.rel (0) target = $region21
    $region20: #{tpu_custom_call.1} parent=1 // pred_region
      _
    $region21: #{tpu_custom_call.1} parent=1 // pred_fallthru
      _
    // Predicated region
    $region22: #{tpu_custom_call.1} parent=1 // pred_check
      _
    $region23: #{tpu_custom_call.1} parent=1 // pred_check_branch
      %47 = sbr.rel (0) target = $region25
    $region24: #{tpu_custom_call.1} parent=1 // pred_region
      _
    $region25: #{tpu_custom_call.1} parent=1 // pred_fallthru
      _
    // Predicated region
    $region26: #{tpu_custom_call.1} parent=1 // pred_check
      _
    $region27: #{tpu_custom_call.1} parent=1 // pred_check_branch
      %49 = sbr.rel (0) target = $region29
    $region28: #{tpu_custom_call.1} parent=1 // pred_region
      _
    $region29: #{tpu_custom_call.1} parent=1 // pred_fallthru
      _
    // Predicated region
    $region30: #{tpu_custom_call.1} parent=1 // pred_check
      _
    $region31: #{tpu_custom_call.1} parent=1 // pred_check_branch
      %51 = sbr.rel (0) target = $region33
    $region32: #{tpu_custom_call.1} parent=1 // pred_region
      _
    $region33: #{tpu_custom_call.1} parent=1 // pred_fallthru
      _
    // Predicated region
    $region34: #{tpu_custom_call.1} parent=1 // pred_check
      _
    $region35: #{tpu_custom_call.1} parent=1 // pred_check_branch
      %53 = sbr.rel (0) target = $region37
    $region36: #{tpu_custom_call.1} parent=1 // pred_region
      _
    $region37: #{tpu_custom_call.1} parent=1 // pred_fallthru
      _
    // Predicated region
    $region38: #{tpu_custom_call.1} parent=1 // pred_check
      _
    $region39: #{tpu_custom_call.1} parent=1 // pred_check_branch
      %55 = sbr.rel (0) target = $region41
    $region40: #{tpu_custom_call.1} parent=1 // pred_region
      %56 = dma.done [#allocation4], 128
    $region41: #{tpu_custom_call.1} parent=1 // pred_fallthru
      _
    // Predicated region
    $region42: #{tpu_custom_call.1} parent=1 // pred_check
      _
    $region43: #{tpu_custom_call.1} parent=1 // pred_check_branch
      %58 = sbr.rel (0) target = $region45
    $region44: #{tpu_custom_call.1} parent=1 // pred_region
      %59 = dma.done [#allocation7], 512
    $region45: #{tpu_custom_call.1} parent=1 // pred_fallthru
      _
    %v60 = vld [vmem:[#allocation3] sm:$0xff]
    %v61 = vld [vmem:[#allocation6] sm:$0xff]
    %v62 = vld [vmem:[#allocation6 + $0x8] sm:$0xff]
    %v63 = vld [vmem:[#allocation6 + $0x10] sm:$0xff]
    %v64 = vld [vmem:[#allocation6 + $0x18] sm:$0xff]
    %v65 = vld [vmem:[%s4] sm:$0x1]
    %v67 = vlaneseq
    %v68 = vshrl.u32 %v67, 7
    %v69 = vsub.s32 0, %v68
    %v70 = vrot.slane %v65, %v69
    %vm72 = vcmask 261120
    %v74 = vsel %vm72, %v60, 0
    %76 = vmatprep.subr.mxu0 0.0
    %77 = vmatpush1.msra.mxu0 %v61
    %78 = vmatprep.subr.mxu0 0.0
    %79 = vmatpush1.msra.mxu0 %v62
    %80 = vmatprep.subr.mxu0 0.0
    %81 = vmatpush1.msra.mxu0 %v63
    %82 = vmatprep.subr.mxu0 0.0
    %83 = vmatpush1.msra.mxu0 %v64
    %84 = vmatprep.subr.mxu0 0.0
    %85 = vmatpush1.msra.mxu0 0.0
    %86 = vmatprep.subr.mxu0 0.0
    %87 = vmatpush1.msra.mxu0 0.0
    %88 = vmatprep.subr.mxu0 0.0
    %89 = vmatpush1.msra.mxu0 0.0
    %90 = vmatprep.subr.mxu0 0.0
    %91 = vmatpush1.msra.mxu0 0.0
    %92 = vmatprep.subr.mxu0 0.0
    %93 = vmatpush1.msra.mxu0 0.0
    %94 = vmatprep.subr.mxu0 0.0
    %95 = vmatpush1.msra.mxu0 0.0
    %96 = vmatprep.subr.mxu0 0.0
    %97 = vmatpush1.msra.mxu0 0.0
    %98 = vmatprep.subr.mxu0 0.0
    %99 = vmatpush1.msra.mxu0 0.0
    %100 = vmatprep.subr.mxu0 0.0
    %101 = vmatpush1.msra.mxu0 0.0
    %102 = vmatprep.subr.mxu0 0.0
    %103 = vmatpush1.msra.mxu0 0.0
    %104 = vmatprep.subr.mxu0 0.0
    %105 = vmatpush1.msra.mxu0 0.0
    %106 = vmatprep.subr.mxu0 0.0
    %107 = vmatpush1.msra.mxu0 0.0
    %108 = vmatprep.subr.mxu0 0.0
    %109 = vmatpush1.msra.mxu0 0.0
    %110 = vmatprep.subr.mxu0 0.0
    %111 = vmatpush1.msra.mxu0 0.0
    %112 = vmatprep.subr.mxu0 0.0
    %113 = vmatpush1.msra.mxu0 0.0
    %114 = vmatprep.subr.mxu0 0.0
    %115 = vmatpush1.msra.mxu0 0.0
    %116 = vmatprep.subr.mxu0 0.0
    %117 = vmatpush1.msra.mxu0 0.0
    %118 = vmatprep.subr.mxu0 0.0
    %119 = vmatpush1.msra.mxu0 0.0
    %120 = vmatprep.subr.mxu0 0.0
    %121 = vmatpush1.msra.mxu0 0.0
    %122 = vmatprep.subr.mxu0 0.0
    %123 = vmatpush1.msra.mxu0 0.0
    %124 = vmatprep.subr.mxu0 0.0
    %125 = vmatpush1.msra.mxu0 0.0
    %126 = vmatprep.subr.mxu0 0.0
    %127 = vmatpush1.msra.mxu0 0.0
    %128 = vmatprep.subr.mxu0 0.0
    %129 = vmatpush1.msra.mxu0 0.0
    %130 = vmatprep.subr.mxu0 0.0
    %131 = vmatpush1.msra.mxu0 0.0
    %132 = vmatprep.subr.mxu0 0.0
    %133 = vmatpush1.msra.mxu0 0.0
    %134 = vmatprep.subr.mxu0 0.0
    %135 = vmatpush1.msra.mxu0 0.0
    %136 = vmatprep.subr.mxu0 0.0
    %137 = vmatpush1.msra.mxu0 0.0
    %138 = vmatprep.subr.mxu0 0.0
    %139 = vmatpush1.msra.mxu0 0.0
    %140 = vmatprep.mubr.f32.mxu0 0.0
    %141 = vmatmul.mubr.f32.gmra.mrb[0].mxu0 %v74
    %v142 = vpop.f32.mrb[0].mxu0
    %v143 = vadd.f32 %v70, %v142
    %v144 = vpop.f32.mrb[0].mxu0
    %145 = vdwg.mxu0
    %v146 = vld [vmem:[%s0] sm:$0xff]
    %v147 = vld [vmem:[%s0 + $0x8] sm:$0xff]
    %v148 = vld [vmem:[%s0 + $0x10] sm:$0xff]
    %v149 = vld [vmem:[%s2] sm:$0xff]
    %v150 = vld [vmem:[%s2 + $0x8] sm:$0xff]
    %v151 = vld [vmem:[%s2 + $0x10] sm:$0xff]
    %v152 = vld [vmem:[%s2 + $0x18] sm:$0xff]
    %v154 = vsel %vm72, %v146, 0
    %v157 = vsel %vm72, %v147, 0
    %v160 = vsel %vm72, %v148, 0
    %162 = vmatprep.subr.mxu0 0.0
    %163 = vmatpush1.msra.mxu0 %v149
    %164 = vmatprep.subr.mxu0 0.0
    %165 = vmatpush1.msra.mxu0 %v150
    %166 = vmatprep.subr.mxu0 0.0
    %167 = vmatpush1.msra.mxu0 %v151
    %168 = vmatprep.subr.mxu0 0.0
    %169 = vmatpush1.msra.mxu0 %v152
    %170 = vmatprep.subr.mxu0 0.0
    %171 = vmatpush1.msra.mxu0 0.0
    %172 = vmatprep.subr.mxu0 0.0
    %173 = vmatpush1.msra.mxu0 0.0
    %174 = vmatprep.subr.mxu0 0.0
    %175 = vmatpush1.msra.mxu0 0.0
    %176 = vmatprep.subr.mxu0 0.0
    %177 = vmatpush1.msra.mxu0 0.0
    %178 = vmatprep.subr.mxu0 0.0
    %179 = vmatpush1.msra.mxu0 0.0
    %180 = vmatprep.subr.mxu0 0.0
    %181 = vmatpush1.msra.mxu0 0.0
    %182 = vmatprep.subr.mxu0 0.0
    %183 = vmatpush1.msra.mxu0 0.0
    %184 = vmatprep.subr.mxu0 0.0
    %185 = vmatpush1.msra.mxu0 0.0
    %186 = vmatprep.subr.mxu0 0.0
    %187 = vmatpush1.msra.mxu0 0.0
    %188 = vmatprep.subr.mxu0 0.0
    %189 = vmatpush1.msra.mxu0 0.0
    %190 = vmatprep.subr.mxu0 0.0
    %191 = vmatpush1.msra.mxu0 0.0
    %192 = vmatprep.subr.mxu0 0.0
    %193 = vmatpush1.msra.mxu0 0.0
    %194 = vmatprep.subr.mxu0 0.0
    %195 = vmatpush1.msra.mxu0 0.0
    %196 = vmatprep.subr.mxu0 0.0
    %197 = vmatpush1.msra.mxu0 0.0
    %198 = vmatprep.subr.mxu0 0.0
    %199 = vmatpush1.msra.mxu0 0.0
    %200 = vmatprep.subr.mxu0 0.0
    %201 = vmatpush1.msra.mxu0 0.0
    %202 = vmatprep.subr.mxu0 0.0
    %203 = vmatpush1.msra.mxu0 0.0
    %204 = vmatprep.subr.mxu0 0.0
    %205 = vmatpush1.msra.mxu0 0.0
    %206 = vmatprep.subr.mxu0 0.0
    %207 = vmatpush1.msra.mxu0 0.0
    %208 = vmatprep.subr.mxu0 0.0
    %209 = vmatpush1.msra.mxu0 0.0
    %210 = vmatprep.subr.mxu0 0.0
    %211 = vmatpush1.msra.mxu0 0.0
    %212 = vmatprep.subr.mxu0 0.0
    %213 = vmatpush1.msra.mxu0 0.0
    %214 = vmatprep.subr.mxu0 0.0
    %215 = vmatpush1.msra.mxu0 0.0
    %216 = vmatprep.subr.mxu0 0.0
    %217 = vmatpush1.msra.mxu0 0.0
    %218 = vmatprep.subr.mxu0 0.0
    %219 = vmatpush1.msra.mxu0 0.0
    %220 = vmatprep.subr.mxu0 0.0
    %221 = vmatpush1.msra.mxu0 0.0
    %222 = vmatprep.subr.mxu0 0.0
    %223 = vmatpush1.msra.mxu0 0.0
    %224 = vmatprep.subr.mxu0 0.0
    %225 = vmatpush1.msra.mxu0 0.0
    %226 = vmatprep.mubr.f32.mxu0 0.0
    %227 = vmatmul.mubr.f32.gmra.mrb[0].mxu0 %v154
    %v228 = vpop.f32.mrb[0].mxu0
    %v229 = vadd.f32 0.0, %v228
    %v230 = vpop.f32.mrb[0].mxu0
    %231 = vmatprep.mubr.f32.mxu0 0.0
    %232 = vmatmul.mubr.f32.gmra.mrb[0].mxu0 %v157
    %v233 = vpop.f32.mrb[0].mxu0
    %v234 = vadd.f32 0.0, %v233
    %v235 = vpop.f32.mrb[0].mxu0
    %236 = vmatprep.mubr.f32.mxu0 0.0
    %237 = vmatmul.mubr.f32.gmra.mrb[0].mxu0 %v160
    %v238 = vpop.f32.mrb[0].mxu0
    %v239 = vadd.f32 0.0, %v238
    %v240 = vpop.f32.mrb[0].mxu0
    %241 = vdwg.mxu0
    %v242 = vadd.f32 %v229, %v143
    %v243 = vadd.f32 %v234, %v143
    %v244 = vadd.f32 %v239, %v143
    %v245 = vtanh.pop %v242
    %v246 = vtanh.pop %v243
    %v247 = vtanh.pop %v244
    %v248 = vld [vmem:[%s5] sm:$0xff]
    %v249 = vld [vmem:[%s5 + $0x8] sm:$0xff]
    %v250 = vld [vmem:[%s5 + $0x10] sm:$0xff]
    %v251 = vld [vmem:[%s5 + $0x18] sm:$0xff]
    %v252 = vld [vmem:[%s6] sm:$0x1]
    %v254 = vlaneseq
    %v255 = vshrl.u32 %v254, 7
    %v256 = vsub.s32 0, %v255
    %v257 = vrot.slane %v252, %v256
    %v260 = vsel %vm72, %v245, 0
    %v263 = vsel %vm72, %v246, 0
    %v266 = vsel %vm72, %v247, 0
    %268 = vmatprep.subr.mxu0 0.0
    %269 = vmatpush1.msra.mxu0 %v248
    %270 = vmatprep.subr.mxu0 0.0
    %271 = vmatpush1.msra.mxu0 %v249
    %272 = vmatprep.subr.mxu0 0.0
    %273 = vmatpush1.msra.mxu0 %v250
    %274 = vmatprep.subr.mxu0 0.0
    %275 = vmatpush1.msra.mxu0 %v251
    %276 = vmatprep.subr.mxu0 0.0
    %277 = vmatpush1.msra.mxu0 0.0
    %278 = vmatprep.subr.mxu0 0.0
    %279 = vmatpush1.msra.mxu0 0.0
    %280 = vmatprep.subr.mxu0 0.0
    %281 = vmatpush1.msra.mxu0 0.0
    %282 = vmatprep.subr.mxu0 0.0
    %283 = vmatpush1.msra.mxu0 0.0
    %284 = vmatprep.subr.mxu0 0.0
    %285 = vmatpush1.msra.mxu0 0.0
    %286 = vmatprep.subr.mxu0 0.0
    %287 = vmatpush1.msra.mxu0 0.0
    %288 = vmatprep.subr.mxu0 0.0
    %289 = vmatpush1.msra.mxu0 0.0
    %290 = vmatprep.subr.mxu0 0.0
    %291 = vmatpush1.msra.mxu0 0.0
    %292 = vmatprep.subr.mxu0 0.0
    %293 = vmatpush1.msra.mxu0 0.0
    %294 = vmatprep.subr.mxu0 0.0
    %295 = vmatpush1.msra.mxu0 0.0
    %296 = vmatprep.subr.mxu0 0.0
    %297 = vmatpush1.msra.mxu0 0.0
    %298 = vmatprep.subr.mxu0 0.0
    %299 = vmatpush1.msra.mxu0 0.0
    %300 = vmatprep.subr.mxu0 0.0
    %301 = vmatpush1.msra.mxu0 0.0
    %302 = vmatprep.subr.mxu0 0.0
    %303 = vmatpush1.msra.mxu0 0.0
    %304 = vmatprep.subr.mxu0 0.0
    %305 = vmatpush1.msra.mxu0 0.0
    %306 = vmatprep.subr.mxu0 0.0
    %307 = vmatpush1.msra.mxu0 0.0
    %308 = vmatprep.subr.mxu0 0.0
    %309 = vmatpush1.msra.mxu0 0.0
    %310 = vmatprep.subr.mxu0 0.0
    %311 = vmatpush1.msra.mxu0 0.0
    %312 = vmatprep.subr.mxu0 0.0
    %313 = vmatpush1.msra.mxu0 0.0
    %314 = vmatprep.subr.mxu0 0.0
    %315 = vmatpush1.msra.mxu0 0.0
    %316 = vmatprep.subr.mxu0 0.0
    %317 = vmatpush1.msra.mxu0 0.0
    %318 = vmatprep.subr.mxu0 0.0
    %319 = vmatpush1.msra.mxu0 0.0
    %320 = vmatprep.subr.mxu0 0.0
    %321 = vmatpush1.msra.mxu0 0.0
    %322 = vmatprep.subr.mxu0 0.0
    %323 = vmatpush1.msra.mxu0 0.0
    %324 = vmatprep.subr.mxu0 0.0
    %325 = vmatpush1.msra.mxu0 0.0
    %326 = vmatprep.subr.mxu0 0.0
    %327 = vmatpush1.msra.mxu0 0.0
    %328 = vmatprep.subr.mxu0 0.0
    %329 = vmatpush1.msra.mxu0 0.0
    %330 = vmatprep.subr.mxu0 0.0
    %331 = vmatpush1.msra.mxu0 0.0
    %332 = vmatprep.mubr.f32.mxu0 0.0
    %333 = vmatmul.mubr.f32.gmra.mrb[0].mxu0 %v260
    %v334 = vpop.f32.mrb[0].mxu0
    %v335 = vadd.f32 %v257, %v334
    %v336 = vpop.f32.mrb[0].mxu0
    %337 = vmatprep.mubr.f32.mxu0 0.0
    %338 = vmatmul.mubr.f32.gmra.mrb[0].mxu0 %v263
    %v339 = vpop.f32.mrb[0].mxu0
    %v340 = vadd.f32 %v257, %v339
    %v341 = vpop.f32.mrb[0].mxu0
    %342 = vmatprep.mubr.f32.mxu0 0.0
    %343 = vmatmul.mubr.f32.gmra.mrb[0].mxu0 %v266
    %v344 = vpop.f32.mrb[0].mxu0
    %v345 = vadd.f32 %v257, %v344
    %v346 = vpop.f32.mrb[0].mxu0
    %347 = vdwg.mxu0
    %v348 = vtanh.pop %v335
    %v349 = vtanh.pop %v340
    %v350 = vtanh.pop %v345
    %v351 = vld [vmem:[%s7] sm:$0x1]
    %v353 = vlaneseq
    %v354 = vshrl.u32 %v353, 7
    %v355 = vsub.s32 0, %v354
    %v356 = vrot.slane %v351, %v355
    %v358 = vmul.f32 %v348, %v356
    %v359 = vmul.f32 %v349, %v356
    %v360 = vmul.f32 %v350, %v356
    %vm361 = vcmask 130048
    %v362 = vsel %vm361, %v358, 0.0
    %363 = vadd.xlane.f32.xlu0 %v362
    %v364 = vpop.xlane.xlu0 %363
    %v365 = vsel %vm361, %v359, 0.0
    %366 = vadd.xlane.f32.xlu0 %v365
    %v367 = vpop.xlane.xlu0 %366
    %v368 = vsel %vm361, %v360, 0.0
    %369 = vadd.xlane.f32.xlu0 %v368
    %v370 = vpop.xlane.xlu0 %369
    %s371 = sld [smem:[#allocation2]]
    %v372 = vstv %s371
    %v373 = vadd.f32 %v364, %v372
    %v374 = vadd.f32 %v367, %v372
    %v375 = vadd.f32 %v370, %v372
    %v379 = vlaneseq
    %v380 = vand.u32 %v379, 127
    %v381 = vlaneseq
    %v382 = vshrl.u32 %v381, 7
    %v383 = vsub.s32 %v380, %v382
    %v384 = vrot.slane %v373, %v383
    %v385 = vlaneseq
    %v386 = vshrl.u32 %v385, 7
    %v387 = vsub.s32 %v380, %v386
    %v388 = vrot.slane %v374, %v387
    %v389 = vlaneseq
    %v390 = vshrl.u32 %v389, 7
    %v391 = vsub.s32 %v380, %v390
    %v392 = vrot.slane %v375, %v391
    %vm393 = vcmask 1041409
    %v394 = vsel %vm393, %v388, %v384
    %vm395 = vcmask 1042434
    %v396 = vsel %vm395, %v392, %v394
    %vm398 = vcmask 59392
    %399 = vst.msk [vmem:[#allocation8] sm:$0x7] %vm398, %v396
    // Predicated region
    $region46: #{tpu_custom_call.1} parent=1 // pred_check
      _
    $region47: #{tpu_custom_call.1} parent=1 // pred_check_branch
      %401 = sbr.rel (0) target = $region49
    $region48: #{tpu_custom_call.1} parent=1 // pred_region
      %s403 = ssub.s32 64, 64
      %404 = vsyncadd [#allocation5], %s403
      %s406 = sshll.u32 [#allocation8], 4
      %s407 = int_to_ptr.vmem [resolvable:$true] %s406
      %409 = dma.vmem_to_hbm [thread:$0]  %s407, 64, %s9, [#allocation5]
    $region49: #{tpu_custom_call.1} parent=1 // pred_fallthru
      _
    // Predicated region
    $region50: #{tpu_custom_call.1} parent=1 // pred_check
      _
    $region51: #{tpu_custom_call.1} parent=1 // pred_check_branch
      %411 = sbr.rel (0) target = $region53
    $region52: #{tpu_custom_call.1} parent=1 // pred_region
      %412 = dma.done [#allocation5], 64
    $region53: #{tpu_custom_call.1} parent=1 // pred_fallthru
      _
    %413 = vsyncpa [#allocation4], 1
    %414 = vsyncpa [#allocation7], 1
    %415 = vsyncpa [#allocation5], 1

</llo_original>
